<compile_context>
chip_gen: v7x
topology: tpu7x:2x2x1
jax: 0.10.0
libtpu: 0.0.40
codegen_flags: <defaults>
</compile_context>

<pallas_src>
import functools
import math

import jax
import jax.numpy as jnp
from jax import lax
from jax.experimental import pallas as pl
from jax.experimental.pallas import tpu as pltpu


def _transformer_lm_kernel(nh, hs, eps,
                           idx_ref, pe_ref, emb_ref, vec_ref,
                           wqkv_ref, wo_ref, w1_ref, w2_ref, wl_ref,
                           hmask_ref, bias_ref,
                           out_ref):
    bf16 = jnp.bfloat16
    f32 = jnp.float32

    N = idx_ref.shape[0]              # rows in this slab (= bb * T)
    C = wo_ref.shape[0]               # embed size
    Vemb = emb_ref.shape[0]           # padded vocab (embedding table rows)
    F = w1_ref.shape[1]               # ffn hidden (4*C)
    Vp = wl_ref.shape[1]              # padded vocab (lm head cols)

    # ---- packed bias / LN vectors (one const slab) ----
    vec = vec_ref[...]
    ln1_g, ln1_b, bo = vec[0, :C], vec[1, :C], vec[2, :C]
    ln2_g, ln2_b, b2 = vec[3, :C], vec[4, :C], vec[5, :C]
    b1 = vec[6, :F]
    bl = vec[7, :Vp]                  # pad cols hold -1e30

    # ---- fused embedding gather (one-hot f32 matmul -> exact) + PE add ----
    ids = idx_ref[...]                                            # (N, 1) int32
    onehot = (ids == lax.broadcasted_iota(jnp.int32, (N, Vemb), 1)).astype(f32)
    x = jnp.dot(onehot, emb_ref[...], preferred_element_type=f32) + pe_ref[...]

    def layernorm(h, g, b):
        mu = jnp.mean(h, axis=-1, keepdims=True)
        var = jnp.mean(jnp.square(h - mu), axis=-1, keepdims=True)
        return (h - mu) * lax.rsqrt(var + eps) * g + b

    # ---- multi-head causal self-attention (pre-LN, residual) ----
    h = layernorm(x, ln1_g, ln1_b).astype(bf16)
    qkv = jnp.dot(h, wqkv_ref[...], preferred_element_type=f32)   # (N, 3C)
    q = qkv[:, :C]
    k = qkv[:, C:2 * C]
    v = qkv[:, 2 * C:3 * C]

    # Head-block-diagonal replicas of K / V (precomputed 0/1 mask): all heads
    # handled by dense 2-D MXU matmuls, no per-head slicing / concat.
    hmask = hmask_ref[...]                                        # (nh*N, C) bf16
    k_big = jnp.tile(k, (nh, 1)).astype(bf16) * hmask
    v_big = jnp.tile(v, (nh, 1)).astype(bf16) * hmask

    # scores[i, g*N + j] = <q_i, k_j> restricted to head g.
    scores = lax.dot_general(q.astype(bf16), k_big,
                             (((1,), (1,)), ((), ())),
                             preferred_element_type=f32) * (hs ** -0.5)
    scores = scores + bias_ref[...]          # causal / same-sequence additive mask

    # Hand-rolled softmax: shared row max (valid per-head stabiliser), bf16
    # numerator matmul, f32 denominator matmul (avoids bf16 underflow -> inf).
    e = jnp.exp(scores - jnp.max(scores, axis=-1, keepdims=True))          # f32
    num = jnp.dot(e.astype(bf16), v_big, preferred_element_type=f32)       # (N, C)
    den = jnp.dot(e, hmask.astype(f32), preferred_element_type=f32)        # f32
    sa = num * pl.reciprocal(jnp.maximum(den, 1e-30), approx=True)

    sa = jnp.dot(sa.astype(bf16), wo_ref[...], preferred_element_type=f32) + bo
    # TODO(synk): dropout (attention / ffwd / PE) omitted -- inference/eval semantics.
    x = x + sa

    # ---- feed-forward (Linear -> ReLU -> Linear, residual) ----
    h = layernorm(x, ln2_g, ln2_b).astype(bf16)
    ff = jnp.dot(h, w1_ref[...], preferred_element_type=f32) + b1
    ff = jnp.maximum(ff, 0.0).astype(bf16)
    ff = jnp.dot(ff, w2_ref[...], preferred_element_type=f32) + b2
    x = x + ff

    # ---- lm head: padded, lane-dense vocab -> unmasked vst ----
    logits = jnp.dot(x.astype(bf16), wl_ref[...], preferred_element_type=f32) + bl
    out_ref[...] = logits.astype(out_ref.dtype)


def build_forward(params, *, batch, seq_len, attention_heads,
                  logits_dtype=jnp.float32, eps=1e-5):
    """One-time build: hoists all weight prep / mask construction out of the
    per-call path and returns a jitted forward(idx[, targets]) -> (logits, loss)."""
    f32, bf = jnp.float32, jnp.bfloat16
    emb = params["tok_emb"]
    B, T = batch, seq_len
    V, C = emb.shape
    nh = attention_heads
    assert C % nh == 0
    hs = C // nh
    Vp = ((V + 127) // 128) * 128          # lane-dense padded vocab
    Vemb = Vp                              # padded embedding-table rows
    W = ((max(C, 4 * C, Vp) + 127) // 128) * 128

    # Grid: only split across 2 "parallel" chunks (second v7x TensorCore) when
    # each chunk is big enough to amortise the per-step / cross-core overhead.
    n_chunks = 1
    if B % 2 == 0 and ((B // 2) * T) % 8 == 0 and (B // 2) * T >= 256:
        n_chunks = 2
    bb = B // n_chunks
    N = bb * T                             # rows per grid step
    R = nh * N                             # head-replicated K/V rows

    # ---- hoisted weight prep (runs once) ----
    emb_pad = jnp.zeros((Vemb, C), f32).at[:V].set(emb.astype(f32))
    pe_rep = jnp.tile(params["pe"][:T].astype(f32), (B, 1))          # (B*T, C)

    vec = jnp.zeros((8, W), f32)
    vec = vec.at[0, :C].set(params["ln1_g"][0])
    vec = vec.at[1, :C].set(params["ln1_b"][0])
    vec = vec.at[2, :C].set(params["bo"][0])
    vec = vec.at[3, :C].set(params["ln2_g"][0])
    vec = vec.at[4, :C].set(params["ln2_b"][0])
    vec = vec.at[5, :C].set(params["b2"][0])
    vec = vec.at[6, :4 * C].set(params["b1"][0])
    bl_pad = jnp.full((Vp,), -1e30, f32).at[:V].set(params["bl"][0])
    vec = vec.at[7, :Vp].set(bl_pad)       # pad cols large-negative (argmax safe)

    wqkv = jnp.concatenate(
        [params["wq"], params["wk"], params["wv"]], axis=1).astype(bf)   # (C, 3C)
    wo = params["wo"].astype(bf)
    w1 = params["w1"].astype(bf)
    w2 = params["w2"].astype(bf)
    wl = jnp.pad(params["wl"], ((0, 0), (0, Vp - V))).astype(bf)

    # ---- precomputed attention masks ----
    r_head = jnp.arange(R)[:, None] // N
    c_head = jnp.arange(C)[None, :] // hs
    hmask = (r_head == c_head).astype(bf)                                # (R, C)
    row = jnp.arange(N)[:, None]
    col = jnp.arange(R)[None, :] % N
    ok = (row // T == col // T) & (col % T <= row % T)
    attn_bias = jnp.where(ok, 0.0, -1e30).astype(f32)                    # (N, R)

    const = lambda arr: pl.BlockSpec(arr.shape, lambda i: (0, 0))
    kernel = functools.partial(_transformer_lm_kernel, nh, hs, eps)

    grid_fn = pl.pallas_call(
        kernel,
        grid=(n_chunks,),
        in_specs=[
            pl.BlockSpec((N, 1), lambda i: (i, 0)),       # idx (flattened)
            pl.BlockSpec((N, C), lambda i: (i, 0)),       # positional encoding slab
            const(emb_pad), const(vec),
            const(wqkv), const(wo), const(w1), const(w2), const(wl),
            const(hmask), const(attn_bias),
        ],
        out_specs=pl.BlockSpec((N, Vp), lambda i: (i, 0)),
        out_shape=jax.ShapeDtypeStruct((B * T, Vp), logits_dtype),
        compiler_params=pltpu.CompilerParams(
            dimension_semantics=("parallel",),
            vmem_limit_bytes=4 * 1024 * 1024,
        ),
    )

    def fwd(idx, targets=None):
        idx2 = idx.reshape(B * T, 1).astype(jnp.int32)
        out = grid_fn(idx2, pe_rep, emb_pad, vec,
                      wqkv, wo, w1, w2, wl, hmask, attn_bias)
        logits = out.reshape(B, T, Vp)[:, :, :V]
        # TODO(synk): cross-entropy loss path (targets is not None) and in-kernel
        # multinomial sampling for generate() are not implemented.
        return logits, None

    return jax.jit(fwd)


def make_params(key, vocab_size, embed_size, block_size):
    C, V, Tmax = embed_size, vocab_size, block_size
    ks = jax.random.split(key, 8)

    def lin(k, fan_in, fan_out):
        bound = 1.0 / math.sqrt(fan_in)
        return jax.random.uniform(k, (fan_in, fan_out), jnp.float32, -bound, bound)

    # standard sinusoidal positional encoding
    pos = jnp.arange(Tmax, dtype=jnp.float32)[:, None]
    div = jnp.exp(jnp.arange(0, C, 2, dtype=jnp.float32) * (-math.log(10000.0) / C))
    pe = jnp.zeros((Tmax, C), jnp.float32)
    pe = pe.at[:, 0::2].set(jnp.sin(pos * div))
    pe = pe.at[:, 1::2].set(jnp.cos(pos * div))

    return dict(
        tok_emb=jax.random.normal(ks[0], (V, C), jnp.float32) * 0.02,
        pe=pe,
        ln1_g=jnp.ones((1, C), jnp.float32), ln1_b=jnp.zeros((1, C), jnp.float32),
        wq=lin(ks[1], C, C), wk=lin(ks[2], C, C), wv=lin(ks[3], C, C),
        wo=lin(ks[4], C, C), bo=jnp.zeros((1, C), jnp.float32),
        ln2_g=jnp.ones((1, C), jnp.float32), ln2_b=jnp.zeros((1, C), jnp.float32),
        w1=lin(ks[5], C, 4 * C), b1=jnp.zeros((1, 4 * C), jnp.float32),
        w2=lin(ks[6], 4 * C, C), b2=jnp.zeros((1, C), jnp.float32),
        wl=lin(ks[7], C, V), bl=jnp.zeros((1, V), jnp.float32),
    )


def reference_forward(idx, params, *, attention_heads):
    """Pure-JAX mirror of the kernel math (same bf16 rounding points)."""
    bf = jnp.bfloat16
    emb = params["tok_emb"]
    B, T = idx.shape
    V, C = emb.shape
    nh = attention_heads
    hs = C // nh
    x = jnp.take(emb, idx, axis=0) + params["pe"][:T]

    def ln(h, g, b):
        mu = jnp.mean(h, -1, keepdims=True)
        var = jnp.mean(jnp.square(h - mu), -1, keepdims=True)
        return (h - mu) * lax.rsqrt(var + 1e-5) * g[0] + b[0]

    def mm(a, w):
        return jnp.dot(a.astype(bf), w.astype(bf), preferred_element_type=jnp.float32)

    h = ln(x, params["ln1_g"], params["ln1_b"])
    q = mm(h, params["wq"]).reshape(B, T, nh, hs).transpose(0, 2, 1, 3)
    k = mm(h, params["wk"]).reshape(B, T, nh, hs).transpose(0, 2, 1, 3)
    v = mm(h, params["wv"]).reshape(B, T, nh, hs).transpose(0, 2, 1, 3)
    att = jnp.einsum("bhqd,bhkd->bhqk", q.astype(bf), k.astype(bf),
                     preferred_element_type=jnp.float32) * (hs ** -0.5)
    mask = jnp.tril(jnp.ones((T, T), bool))
    att = jnp.where(mask, att, -1e30)
    m = jnp.max(att, axis=(1, 3), keepdims=True)        # shared shift, as in kernel
    e32 = jnp.exp(att - m)                               # f32, as in kernel
    num = jnp.einsum("bhqk,bhkd->bhqd", e32.astype(bf), v.astype(bf),
                     preferred_element_type=jnp.float32)
    den = jnp.sum(e32, axis=-1, keepdims=True)           # f32 denominator
    sa = (num / den).transpose(0, 2, 1, 3).reshape(B, T, C)
    x = x + mm(sa, params["wo"]) + params["bo"][0]
    h = ln(x, params["ln2_g"], params["ln2_b"])
    ff = jnp.maximum(mm(h, params["w1"]) + params["b1"][0], 0.0)
    x = x + mm(ff, params["w2"]) + params["b2"][0]
    return mm(x, params["wl"]) + params["bl"][0]


if __name__ == "__main__":
    vocab_size, embed_size, block_size, attention_heads = 65, 32, 8, 4
    batch = 2

    key = jax.random.PRNGKey(0)
    pkey, ikey = jax.random.split(key)
    params = make_params(pkey, vocab_size, embed_size, block_size)
    idx = jax.random.randint(ikey, (batch, block_size), 0, vocab_size, dtype=jnp.int32)

    fwd = build_forward(params, batch=batch, seq_len=block_size,
                        attention_heads=attention_heads)
    logits, loss = fwd(idx)
    logits = jax.block_until_ready(logits)

    assert loss is None
    assert logits.shape == (batch, block_size, vocab_size)
    assert bool(jnp.all(jnp.isfinite(logits)))
    ref = reference_forward(idx, params, attention_heads=attention_heads)
    assert bool(jnp.allclose(logits, ref, atol=3e-2, rtol=3e-2))
    print("KERNEL_OK")
</pallas_src>

<mosaic_0001>
module attributes {stable_mosaic.version = 11 : i64} {
  func.func @_transformer_lm_kernel(%arg0: i32, %arg1: memref<16x1xi32, #tpu.memory_space<vmem>>, %arg2: memref<16x32xf32, #tpu.memory_space<vmem>>, %arg3: memref<128x32xf32, #tpu.memory_space<vmem>>, %arg4: memref<8x128xf32, #tpu.memory_space<vmem>>, %arg5: memref<32x96xbf16, #tpu.memory_space<vmem>>, %arg6: memref<32x32xbf16, #tpu.memory_space<vmem>>, %arg7: memref<32x128xbf16, #tpu.memory_space<vmem>>, %arg8: memref<128x32xbf16, #tpu.memory_space<vmem>>, %arg9: memref<32x128xbf16, #tpu.memory_space<vmem>>, %arg10: memref<64x32xbf16, #tpu.memory_space<vmem>>, %arg11: memref<16x64xf32, #tpu.memory_space<vmem>>, %arg12: memref<16x128xf32, #tpu.memory_space<vmem>>) attributes {dimension_semantics = [#tpu.dimension_semantics<parallel>], iteration_bounds = array<i64: 1>, scalar_prefetch = 0 : i64, scratch_operands = 0 : i64, tpu.core_type = #tpu.core_type<tc>, window_params = [{transform_indices = @transform_0, window_bounds = array<i64: 16, 1>}, {transform_indices = @transform_1, window_bounds = array<i64: 16, 32>}, {pipeline_mode = #tpu.pipeline_mode<synchronous>, transform_indices = @transform_2, window_bounds = array<i64: 128, 32>}, {pipeline_mode = #tpu.pipeline_mode<synchronous>, transform_indices = @transform_3, window_bounds = array<i64: 8, 128>}, {pipeline_mode = #tpu.pipeline_mode<synchronous>, transform_indices = @transform_4, window_bounds = array<i64: 32, 96>}, {pipeline_mode = #tpu.pipeline_mode<synchronous>, transform_indices = @transform_5, window_bounds = array<i64: 32, 32>}, {pipeline_mode = #tpu.pipeline_mode<synchronous>, transform_indices = @transform_6, window_bounds = array<i64: 32, 128>}, {pipeline_mode = #tpu.pipeline_mode<synchronous>, transform_indices = @transform_7, window_bounds = array<i64: 128, 32>}, {pipeline_mode = #tpu.pipeline_mode<synchronous>, transform_indices = @transform_8, window_bounds = array<i64: 32, 128>}, {pipeline_mode = #tpu.pipeline_mode<synchronous>, transform_indices = @transform_9, window_bounds = array<i64: 64, 32>}, {pipeline_mode = #tpu.pipeline_mode<synchronous>, transform_indices = @transform_10, window_bounds = array<i64: 16, 64>}, {transform_indices = @transform_11, window_bounds = array<i64: 16, 128>}]} {
    %c0 = arith.constant 0 : index
    %c0_0 = arith.constant 0 : index
    %0 = vector.load %arg4[%c0, %c0_0] : memref<8x128xf32, #tpu.memory_space<vmem>>, vector<8x128xf32>
    %1 = vector.extract_strided_slice %0 {offsets = [0, 0], sizes = [1, 32], strides = [1, 1]} : vector<8x128xf32> to vector<1x32xf32>
    %2 = vector.shape_cast %1 : vector<1x32xf32> to vector<32xf32>
    %3 = vector.extract_strided_slice %0 {offsets = [1, 0], sizes = [1, 32], strides = [1, 1]} : vector<8x128xf32> to vector<1x32xf32>
    %4 = vector.shape_cast %3 : vector<1x32xf32> to vector<32xf32>
    %5 = vector.extract_strided_slice %0 {offsets = [2, 0], sizes = [1, 32], strides = [1, 1]} : vector<8x128xf32> to vector<1x32xf32>
    %6 = vector.shape_cast %5 : vector<1x32xf32> to vector<32xf32>
    %7 = vector.extract_strided_slice %0 {offsets = [3, 0], sizes = [1, 32], strides = [1, 1]} : vector<8x128xf32> to vector<1x32xf32>
    %8 = vector.shape_cast %7 : vector<1x32xf32> to vector<32xf32>
    %9 = vector.extract_strided_slice %0 {offsets = [4, 0], sizes = [1, 32], strides = [1, 1]} : vector<8x128xf32> to vector<1x32xf32>
    %10 = vector.shape_cast %9 : vector<1x32xf32> to vector<32xf32>
    %11 = vector.extract_strided_slice %0 {offsets = [5, 0], sizes = [1, 32], strides = [1, 1]} : vector<8x128xf32> to vector<1x32xf32>
    %12 = vector.shape_cast %11 : vector<1x32xf32> to vector<32xf32>
    %13 = vector.extract_strided_slice %0 {offsets = [6, 0], sizes = [1, 128], strides = [1, 1]} : vector<8x128xf32> to vector<1x128xf32>
    %14 = vector.shape_cast %13 : vector<1x128xf32> to vector<128xf32>
    %15 = vector.extract_strided_slice %0 {offsets = [7, 0], sizes = [1, 128], strides = [1, 1]} : vector<8x128xf32> to vector<1x128xf32>
    %16 = vector.shape_cast %15 : vector<1x128xf32> to vector<128xf32>
    %c0_1 = arith.constant 0 : index
    %c0_2 = arith.constant 0 : index
    %17 = vector.load %arg1[%c0_1, %c0_2] : memref<16x1xi32, #tpu.memory_space<vmem>>, vector<16x1xi32>
    %18 = tpu.iota {dimensions = array<i32: 1>} : vector<16x128xi32>
    %19 = vector.broadcast %17 : vector<16x1xi32> to vector<16x128xi32>
    %20 = arith.cmpi eq, %19, %18 : vector<16x128xi32>
    %21 = arith.extui %20 : vector<16x128xi1> to vector<16x128xi32>
    %22 = arith.sitofp %21 : vector<16x128xi32> to vector<16x128xf32>
    %c0_3 = arith.constant 0 : index
    %c0_4 = arith.constant 0 : index
    %23 = vector.load %arg3[%c0_3, %c0_4] : memref<128x32xf32, #tpu.memory_space<vmem>>, vector<128x32xf32>
    %cst = arith.constant dense<0.000000e+00> : vector<16x32xf32>
    %24 = tpu.matmul %22, %23, %cst {dimension_numbers = #tpu.dot_dimension_numbers<[1], [0], [0], [1], [0, 0, 1, 1], [], []>} : vector<16x128xf32>, vector<128x32xf32>, vector<16x32xf32> -> vector<16x32xf32>
    %c0_5 = arith.constant 0 : index
    %c0_6 = arith.constant 0 : index
    %25 = vector.load %arg2[%c0_5, %c0_6] : memref<16x32xf32, #tpu.memory_space<vmem>>, vector<16x32xf32>
    %26 = arith.addf %24, %25 : vector<16x32xf32>
    %cst_7 = arith.constant dense<0.000000e+00> : vector<16xf32>
    %27 = vector.multi_reduction <add>, %26, %cst_7 [1] : vector<16x32xf32> to vector<16xf32>
    %28 = vector.shape_cast %27 : vector<16xf32> to vector<16x1xf32>
    %cst_8 = arith.constant 3.200000e+01 : f32
    %29 = vector.broadcast %cst_8 : f32 to vector<16x1xf32>
    %30 = arith.divf %28, %29 : vector<16x1xf32>
    %31 = vector.broadcast %30 : vector<16x1xf32> to vector<16x32xf32>
    %32 = arith.subf %26, %31 : vector<16x32xf32>
    %33 = arith.mulf %32, %32 : vector<16x32xf32>
    %cst_9 = arith.constant dense<0.000000e+00> : vector<16xf32>
    %34 = vector.multi_reduction <add>, %33, %cst_9 [1] : vector<16x32xf32> to vector<16xf32>
    %35 = vector.shape_cast %34 : vector<16xf32> to vector<16x1xf32>
    %cst_10 = arith.constant 3.200000e+01 : f32
    %36 = vector.broadcast %cst_10 : f32 to vector<16x1xf32>
    %37 = arith.divf %35, %36 : vector<16x1xf32>
    %38 = vector.broadcast %30 : vector<16x1xf32> to vector<16x32xf32>
    %39 = arith.subf %26, %38 : vector<16x32xf32>
    %cst_11 = arith.constant 9.99999974E-6 : f32
    %40 = vector.broadcast %cst_11 : f32 to vector<16x1xf32>
    %41 = arith.addf %37, %40 : vector<16x1xf32>
    %42 = math.rsqrt %41 : vector<16x1xf32>
    %43 = vector.broadcast %42 : vector<16x1xf32> to vector<16x32xf32>
    %44 = arith.mulf %39, %43 : vector<16x32xf32>
    %45 = vector.shape_cast %2 : vector<32xf32> to vector<1x32xf32>
    %46 = vector.broadcast %45 : vector<1x32xf32> to vector<16x32xf32>
    %47 = arith.mulf %44, %46 : vector<16x32xf32>
    %48 = vector.shape_cast %4 : vector<32xf32> to vector<1x32xf32>
    %49 = vector.broadcast %48 : vector<1x32xf32> to vector<16x32xf32>
    %50 = arith.addf %47, %49 : vector<16x32xf32>
    %51 = arith.truncf %50 : vector<16x32xf32> to vector<16x32xbf16>
    %c0_12 = arith.constant 0 : index
    %c0_13 = arith.constant 0 : index
    %52 = vector.load %arg5[%c0_12, %c0_13] : memref<32x96xbf16, #tpu.memory_space<vmem>>, vector<32x96xbf16>
    %cst_14 = arith.constant dense<0.000000e+00> : vector<16x96xf32>
    %53 = tpu.matmul %51, %52, %cst_14 {dimension_numbers = #tpu.dot_dimension_numbers<[1], [0], [0], [1], [0, 0, 1, 1], [], []>} : vector<16x32xbf16>, vector<32x96xbf16>, vector<16x96xf32> -> vector<16x96xf32>
    %54 = vector.extract_strided_slice %53 {offsets = [0, 0], sizes = [16, 32], strides = [1, 1]} : vector<16x96xf32> to vector<16x32xf32>
    %55 = vector.extract_strided_slice %53 {offsets = [0, 32], sizes = [16, 32], strides = [1, 1]} : vector<16x96xf32> to vector<16x32xf32>
    %56 = vector.extract_strided_slice %53 {offsets = [0, 64], sizes = [16, 32], strides = [1, 1]} : vector<16x96xf32> to vector<16x32xf32>
    %c0_15 = arith.constant 0 : index
    %c0_16 = arith.constant 0 : index
    %57 = vector.load %arg10[%c0_15, %c0_16] : memref<64x32xbf16, #tpu.memory_space<vmem>>, vector<64x32xbf16>
    %58 = tpu.concatenate %55, %55, %55, %55 in 0 : vector<16x32xf32>, vector<16x32xf32>, vector<16x32xf32>, vector<16x32xf32> -> vector<64x32xf32>
    %59 = arith.truncf %58 : vector<64x32xf32> to vector<64x32xbf16>
    %60 = arith.mulf %59, %57 : vector<64x32xbf16>
    %61 = tpu.concatenate %56, %56, %56, %56 in 0 : vector<16x32xf32>, vector<16x32xf32>, vector<16x32xf32>, vector<16x32xf32> -> vector<64x32xf32>
    %62 = arith.truncf %61 : vector<64x32xf32> to vector<64x32xbf16>
    %63 = arith.mulf %62, %57 : vector<64x32xbf16>
    %64 = arith.truncf %54 : vector<16x32xf32> to vector<16x32xbf16>
    %cst_17 = arith.constant dense<0.000000e+00> : vector<16x64xf32>
    %65 = tpu.matmul %64, %60, %cst_17 {dimension_numbers = #tpu.dot_dimension_numbers<[1], [1], [0], [0], [0, 0, 1, 0], [], []>} : vector<16x32xbf16>, vector<64x32xbf16>, vector<16x64xf32> -> vector<16x64xf32>
    %cst_18 = arith.constant 0.353553385 : f32
    %66 = vector.broadcast %cst_18 : f32 to vector<16x64xf32>
    %67 = arith.mulf %65, %66 : vector<16x64xf32>
    %c0_19 = arith.constant 0 : index
    %c0_20 = arith.constant 0 : index
    %68 = vector.load %arg11[%c0_19, %c0_20] : memref<16x64xf32, #tpu.memory_space<vmem>>, vector<16x64xf32>
    %69 = arith.addf %67, %68 : vector<16x64xf32>
    %cst_21 = arith.constant dense<0xFF800000> : vector<16xf32>
    %70 = vector.multi_reduction <maximumf>, %69, %cst_21 [1] : vector<16x64xf32> to vector<16xf32>
    %71 = vector.shape_cast %70 : vector<16xf32> to vector<16x1xf32>
    %72 = vector.broadcast %71 : vector<16x1xf32> to vector<16x64xf32>
    %73 = arith.subf %69, %72 : vector<16x64xf32>
    %74 = math.exp %73 : vector<16x64xf32>
    %75 = arith.truncf %74 : vector<16x64xf32> to vector<16x64xbf16>
    %cst_22 = arith.constant dense<0.000000e+00> : vector<16x32xf32>
    %76 = tpu.matmul %75, %63, %cst_22 {dimension_numbers = #tpu.dot_dimension_numbers<[1], [0], [0], [1], [0, 0, 1, 1], [], []>} : vector<16x64xbf16>, vector<64x32xbf16>, vector<16x32xf32> -> vector<16x32xf32>
    %77 = arith.extf %57 : vector<64x32xbf16> to vector<64x32xf32>
    %cst_23 = arith.constant dense<0.000000e+00> : vector<16x32xf32>
    %78 = tpu.matmul %74, %77, %cst_23 {dimension_numbers = #tpu.dot_dimension_numbers<[1], [0], [0], [1], [0, 0, 1, 1], [], []>} : vector<16x64xf32>, vector<64x32xf32>, vector<16x32xf32> -> vector<16x32xf32>
    %cst_24 = arith.constant 1.000000e-30 : f32
    %79 = vector.broadcast %cst_24 : f32 to vector<16x32xf32>
    %80 = arith.maximumf %78, %79 : vector<16x32xf32>
    %81 = tpu.reciprocal %80 {approx = true} : vector<16x32xf32> -> vector<16x32xf32>
    %82 = arith.mulf %76, %81 : vector<16x32xf32>
    %83 = arith.truncf %82 : vector<16x32xf32> to vector<16x32xbf16>
    %c0_25 = arith.constant 0 : index
    %c0_26 = arith.constant 0 : index
    %84 = vector.load %arg6[%c0_25, %c0_26] : memref<32x32xbf16, #tpu.memory_space<vmem>>, vector<32x32xbf16>
    %cst_27 = arith.constant dense<0.000000e+00> : vector<16x32xf32>
    %85 = tpu.matmul %83, %84, %cst_27 {dimension_numbers = #tpu.dot_dimension_numbers<[1], [0], [0], [1], [0, 0, 1, 1], [], []>} : vector<16x32xbf16>, vector<32x32xbf16>, vector<16x32xf32> -> vector<16x32xf32>
    %86 = vector.shape_cast %6 : vector<32xf32> to vector<1x32xf32>
    %87 = vector.broadcast %86 : vector<1x32xf32> to vector<16x32xf32>
    %88 = arith.addf %85, %87 : vector<16x32xf32>
    %89 = arith.addf %26, %88 : vector<16x32xf32>
    %cst_28 = arith.constant dense<0.000000e+00> : vector<16xf32>
    %90 = vector.multi_reduction <add>, %89, %cst_28 [1] : vector<16x32xf32> to vector<16xf32>
    %91 = vector.shape_cast %90 : vector<16xf32> to vector<16x1xf32>
    %cst_29 = arith.constant 3.200000e+01 : f32
    %92 = vector.broadcast %cst_29 : f32 to vector<16x1xf32>
    %93 = arith.divf %91, %92 : vector<16x1xf32>
    %94 = vector.broadcast %93 : vector<16x1xf32> to vector<16x32xf32>
    %95 = arith.subf %89, %94 : vector<16x32xf32>
    %96 = arith.mulf %95, %95 : vector<16x32xf32>
    %cst_30 = arith.constant dense<0.000000e+00> : vector<16xf32>
    %97 = vector.multi_reduction <add>, %96, %cst_30 [1] : vector<16x32xf32> to vector<16xf32>
    %98 = vector.shape_cast %97 : vector<16xf32> to vector<16x1xf32>
    %cst_31 = arith.constant 3.200000e+01 : f32
    %99 = vector.broadcast %cst_31 : f32 to vector<16x1xf32>
    %100 = arith.divf %98, %99 : vector<16x1xf32>
    %101 = vector.broadcast %93 : vector<16x1xf32> to vector<16x32xf32>
    %102 = arith.subf %89, %101 : vector<16x32xf32>
    %cst_32 = arith.constant 9.99999974E-6 : f32
    %103 = vector.broadcast %cst_32 : f32 to vector<16x1xf32>
    %104 = arith.addf %100, %103 : vector<16x1xf32>
    %105 = math.rsqrt %104 : vector<16x1xf32>
    %106 = vector.broadcast %105 : vector<16x1xf32> to vector<16x32xf32>
    %107 = arith.mulf %102, %106 : vector<16x32xf32>
    %108 = vector.shape_cast %8 : vector<32xf32> to vector<1x32xf32>
    %109 = vector.broadcast %108 : vector<1x32xf32> to vector<16x32xf32>
    %110 = arith.mulf %107, %109 : vector<16x32xf32>
    %111 = vector.shape_cast %10 : vector<32xf32> to vector<1x32xf32>
    %112 = vector.broadcast %111 : vector<1x32xf32> to vector<16x32xf32>
    %113 = arith.addf %110, %112 : vector<16x32xf32>
    %114 = arith.truncf %113 : vector<16x32xf32> to vector<16x32xbf16>
    %c0_33 = arith.constant 0 : index
    %c0_34 = arith.constant 0 : index
    %115 = vector.load %arg7[%c0_33, %c0_34] : memref<32x128xbf16, #tpu.memory_space<vmem>>, vector<32x128xbf16>
    %cst_35 = arith.constant dense<0.000000e+00> : vector<16x128xf32>
    %116 = tpu.matmul %114, %115, %cst_35 {dimension_numbers = #tpu.dot_dimension_numbers<[1], [0], [0], [1], [0, 0, 1, 1], [], []>} : vector<16x32xbf16>, vector<32x128xbf16>, vector<16x128xf32> -> vector<16x128xf32>
    %117 = vector.shape_cast %14 : vector<128xf32> to vector<1x128xf32>
    %118 = vector.broadcast %117 : vector<1x128xf32> to vector<16x128xf32>
    %119 = arith.addf %116, %118 : vector<16x128xf32>
    %cst_36 = arith.constant 0.000000e+00 : f32
    %120 = vector.broadcast %cst_36 : f32 to vector<16x128xf32>
    %121 = arith.maximumf %119, %120 : vector<16x128xf32>
    %122 = arith.truncf %121 : vector<16x128xf32> to vector<16x128xbf16>
    %c0_37 = arith.constant 0 : index
    %c0_38 = arith.constant 0 : index
    %123 = vector.load %arg8[%c0_37, %c0_38] : memref<128x32xbf16, #tpu.memory_space<vmem>>, vector<128x32xbf16>
    %cst_39 = arith.constant dense<0.000000e+00> : vector<16x32xf32>
    %124 = tpu.matmul %122, %123, %cst_39 {dimension_numbers = #tpu.dot_dimension_numbers<[1], [0], [0], [1], [0, 0, 1, 1], [], []>} : vector<16x128xbf16>, vector<128x32xbf16>, vector<16x32xf32> -> vector<16x32xf32>
    %125 = vector.shape_cast %12 : vector<32xf32> to vector<1x32xf32>
    %126 = vector.broadcast %125 : vector<1x32xf32> to vector<16x32xf32>
    %127 = arith.addf %124, %126 : vector<16x32xf32>
    %128 = arith.addf %89, %127 : vector<16x32xf32>
    %129 = arith.truncf %128 : vector<16x32xf32> to vector<16x32xbf16>
    %c0_40 = arith.constant 0 : index
    %c0_41 = arith.constant 0 : index
    %130 = vector.load %arg9[%c0_40, %c0_41] : memref<32x128xbf16, #tpu.memory_space<vmem>>, vector<32x128xbf16>
    %cst_42 = arith.constant dense<0.000000e+00> : vector<16x128xf32>
    %131 = tpu.matmul %129, %130, %cst_42 {dimension_numbers = #tpu.dot_dimension_numbers<[1], [0], [0], [1], [0, 0, 1, 1], [], []>} : vector<16x32xbf16>, vector<32x128xbf16>, vector<16x128xf32> -> vector<16x128xf32>
    %132 = vector.shape_cast %16 : vector<128xf32> to vector<1x128xf32>
    %133 = vector.broadcast %132 : vector<1x128xf32> to vector<16x128xf32>
    %134 = arith.addf %131, %133 : vector<16x128xf32>
    %c0_43 = arith.constant 0 : index
    %c0_44 = arith.constant 0 : index
    %135 = vector.load %arg12[%c0_43, %c0_44] : memref<16x128xf32, #tpu.memory_space<vmem>>, vector<16x128xf32>
    tpu.vector_store %arg12[%c0_43, %c0_44], %134 {strides = array<i32>} : memref<16x128xf32, #tpu.memory_space<vmem>>, vector<16x128xf32>,
    return
  }
  func.func @transform_0(%arg0: i32) -> (i32, i32) {
    %c0_i32 = arith.constant 0 : i32
    %c0_i32_0 = arith.constant 0 : i32
    return %arg0, %c0_i32 : i32, i32
  }
  func.func @transform_1(%arg0: i32) -> (i32, i32) {
    %c0_i32 = arith.constant 0 : i32
    %c0_i32_0 = arith.constant 0 : i32
    return %arg0, %c0_i32 : i32, i32
  }
  func.func @transform_2(%arg0: i32) -> (i32, i32) {
    %c0_i32 = arith.constant 0 : i32
    %c0_i32_0 = arith.constant 0 : i32
    %c0_i32_1 = arith.constant 0 : i32
    return %c0_i32, %c0_i32_0 : i32, i32
  }
  func.func @transform_3(%arg0: i32) -> (i32, i32) {
    %c0_i32 = arith.constant 0 : i32
    %c0_i32_0 = arith.constant 0 : i32
    %c0_i32_1 = arith.constant 0 : i32
    return %c0_i32, %c0_i32_0 : i32, i32
  }
  func.func @transform_4(%arg0: i32) -> (i32, i32) {
    %c0_i32 = arith.constant 0 : i32
    %c0_i32_0 = arith.constant 0 : i32
    %c0_i32_1 = arith.constant 0 : i32
    return %c0_i32, %c0_i32_0 : i32, i32
  }
  func.func @transform_5(%arg0: i32) -> (i32, i32) {
    %c0_i32 = arith.constant 0 : i32
    %c0_i32_0 = arith.constant 0 : i32
    %c0_i32_1 = arith.constant 0 : i32
    return %c0_i32, %c0_i32_0 : i32, i32
  }
  func.func @transform_6(%arg0: i32) -> (i32, i32) {
    %c0_i32 = arith.constant 0 : i32
    %c0_i32_0 = arith.constant 0 : i32
    %c0_i32_1 = arith.constant 0 : i32
    return %c0_i32, %c0_i32_0 : i32, i32
  }
  func.func @transform_7(%arg0: i32) -> (i32, i32) {
    %c0_i32 = arith.constant 0 : i32
    %c0_i32_0 = arith.constant 0 : i32
    %c0_i32_1 = arith.constant 0 : i32
    return %c0_i32, %c0_i32_0 : i32, i32
  }
  func.func @transform_8(%arg0: i32) -> (i32, i32) {
    %c0_i32 = arith.constant 0 : i32
    %c0_i32_0 = arith.constant 0 : i32
    %c0_i32_1 = arith.constant 0 : i32
    return %c0_i32, %c0_i32_0 : i32, i32
  }
  func.func @transform_9(%arg0: i32) -> (i32, i32) {
    %c0_i32 = arith.constant 0 : i32
    %c0_i32_0 = arith.constant 0 : i32
    %c0_i32_1 = arith.constant 0 : i32
    return %c0_i32, %c0_i32_0 : i32, i32
  }
  func.func @transform_10(%arg0: i32) -> (i32, i32) {
    %c0_i32 = arith.constant 0 : i32
    %c0_i32_0 = arith.constant 0 : i32
    %c0_i32_1 = arith.constant 0 : i32
    return %c0_i32, %c0_i32_0 : i32, i32
  }
  func.func @transform_11(%arg0: i32) -> (i32, i32) {
    %c0_i32 = arith.constant 0 : i32
    %c0_i32_0 = arith.constant 0 : i32
    return %arg0, %c0_i32 : i32, i32
  }
}

</mosaic_0001>

<llo_original>
// kernel: fwd.1
$region0: #{fwd.1}
  #allocation0 [shape = 'u32[]', space=smem, size = 0x4, offset = 0x4, fixed_abs, tag = 'smem constant byte address 0x4 - core index']
  #allocation1 [shape = 'u32[144,128]{1,0:T(1,128)}', space=vmem, size = 0x12000, scoped, tag = 'internal scratch']
  %s0 = inlined_call_operand.vmem [shape: s32[16,1], index: 0, kind: input, shape index: {}]
  %s1 = inlined_call_operand.hbm [shape: f32[16,32], index: 1, kind: input, shape index: {}]
  %s2 = inlined_call_operand.hbm [shape: f32[128,32], index: 2, kind: input, shape index: {}]
  %s3 = inlined_call_operand.hbm [shape: f32[8,128], index: 3, kind: input, shape index: {}]
  %s4 = inlined_call_operand.hbm [shape: bf16[32,96], index: 4, kind: input, shape index: {}]
  %s5 = inlined_call_operand.hbm [shape: bf16[32,32], index: 5, kind: input, shape index: {}]
  %s6 = inlined_call_operand.hbm [shape: bf16[32,128], index: 6, kind: input, shape index: {}]
  %s7 = inlined_call_operand.vmem [shape: bf16[128,32], index: 7, kind: input, shape index: {}]
  %s8 = inlined_call_operand.hbm [shape: bf16[32,128], index: 8, kind: input, shape index: {}]
  %s9 = inlined_call_operand.hbm [shape: bf16[64,32], index: 9, kind: input, shape index: {}]
  %s10 = inlined_call_operand.hbm [shape: f32[16,64], index: 10, kind: input, shape index: {}]
  %s11 = inlined_call_operand.hbm [shape: f32[16,128], index: 11, kind: output, shape index: {}]
  %s12 = sld [smem:[#allocation0]]
  $region90: #{fwd.1} parent=0
    _
  %s14 = ssub.s32 1, %s12
  %s15 = scalar_select 0, %s14, %s12
  $region1: #{fwd.1} parent=0
    #allocation2 [shape = 'u8[8192]{0}', space=vmem, size = 0x2000, scoped, tag = 'input window, operand 1, single buffered']
    #allocation3 [shape = 's32[1]{0}', space=sflag, size = 0x4, scoped, tag = 'scoped memory for fwd.1']
    #allocation4 [shape = 's32[1]{0}', space=sflag, size = 0x4, scoped, tag = 'scoped memory for fwd.1']
    #allocation5 [shape = 'u8[65536]{0}', space=vmem, size = 0x10000, scoped, tag = 'input window, operand 2, single buffered']
    #allocation6 [shape = 's32[1]{0}', space=sflag, size = 0x4, scoped, tag = 'scoped memory for fwd.1']
    #allocation7 [shape = 'u8[4096]{0}', space=vmem, size = 0x1000, scoped, tag = 'input window, operand 3, single buffered']
    #allocation8 [shape = 'u8[8192]{0}', space=vmem, size = 0x2000, scoped, tag = 'input window, operand 4, single buffered']
    #allocation9 [shape = 's32[1]{0}', space=sflag, size = 0x4, scoped, tag = 'scoped memory for fwd.1']
    #allocation10 [shape = 'u8[8192]{0}', space=vmem, size = 0x2000, scoped, tag = 'input window, operand 5, single buffered']
    #allocation11 [shape = 'u8[8192]{0}', space=vmem, size = 0x2000, scoped, tag = 'input window, operand 6, single buffered']
    #allocation12 [shape = 's32[1]{0}', space=sflag, size = 0x4, scoped, tag = 'scoped memory for fwd.1']
    #allocation13 [shape = 'u8[8192]{0}', space=vmem, size = 0x2000, scoped, tag = 'input window, operand 8, single buffered']
    #allocation14 [shape = 'u8[16384]{0}', space=vmem, size = 0x4000, scoped, tag = 'input window, operand 9, single buffered']
    #allocation15 [shape = 's32[1]{0}', space=sflag, size = 0x4, scoped, tag = 'scoped memory for fwd.1']
    #allocation16 [shape = 'u8[8192]{0}', space=vmem, size = 0x2000, scoped, tag = 'input window, operand 10, single buffered']
    #allocation17 [shape = 'u8[8192]{0}', space=vmem, size = 0x2000, scoped, tag = 'output window, operand 0, single buffered']
    %16 = vsyncpa [#allocation3], 0
    %17 = vsyncpa [#allocation6], 0
    %18 = vsyncpa [#allocation9], 0
    %19 = vsyncpa [#allocation12], 0
    %20 = vsyncpa [#allocation15], 0
    %21 = vsyncpa [#allocation4], 0
    // Predicated region
    $region2: #{fwd.1} parent=1 // pred_check
      _
    $region3: #{fwd.1} parent=1 // pred_check_branch
      %23 = sbr.rel (0) target = $region5
    $region4: #{fwd.1} parent=1 // pred_region
      _
    $region5: #{fwd.1} parent=1 // pred_fallthru
      _
    // Predicated region
    $region6: #{fwd.1} parent=1 // pred_check
      _
    $region7: #{fwd.1} parent=1 // pred_check_branch
      %25 = sbr.rel (0) target = $region9
    $region8: #{fwd.1} parent=1 // pred_region
      %s27 = ssub.s32 256, 256
      %28 = vsyncadd [#allocation3], %s27
      %s29 = sshll.u32 [#allocation2], 4
      %s30 = int_to_ptr.vmem [resolvable:$true] %s29
      %35 = dma.hbm_to_vmem [thread:$0]  %s1, 256, %s30, [#allocation3], 128, 128, 8
    $region9: #{fwd.1} parent=1 // pred_fallthru
      _
    // Predicated region
    $region10: #{fwd.1} parent=1 // pred_check
      _
    $region11: #{fwd.1} parent=1 // pred_check_branch
      %37 = sbr.rel (0) target = $region13
    $region12: #{fwd.1} parent=1 // pred_region
      %s39 = ssub.s32 2048, 2048
      %40 = vsyncadd [#allocation6], %s39
      %s41 = sshll.u32 [#allocation5], 4
      %s42 = int_to_ptr.vmem [resolvable:$true] %s41
      %47 = dma.hbm_to_vmem [thread:$0]  %s2, 2048, %s42, [#allocation6], 128, 128, 8
    $region13: #{fwd.1} parent=1 // pred_fallthru
      _
    // Predicated region
    $region14: #{fwd.1} parent=1 // pred_check
      _
    $region15: #{fwd.1} parent=1 // pred_check_branch
      %49 = sbr.rel (0) target = $region17
    $region16: #{fwd.1} parent=1 // pred_region
      %s51 = ssub.s32 128, 128
      %52 = vsyncadd [#allocation6], %s51
      %s54 = sshll.u32 [#allocation7], 4
      %s55 = int_to_ptr.vmem [resolvable:$true] %s54
      %57 = dma.hbm_to_vmem [thread:$0]  %s3, 128, %s55, [#allocation6]
    $region17: #{fwd.1} parent=1 // pred_fallthru
      _
    // Predicated region
    $region18: #{fwd.1} parent=1 // pred_check
      _
    $region19: #{fwd.1} parent=1 // pred_check_branch
      %59 = sbr.rel (0) target = $region21
    $region20: #{fwd.1} parent=1 // pred_region
      %s61 = ssub.s32 256, 256
      %62 = vsyncadd [#allocation9], %s61
      %s63 = sshll.u32 [#allocation8], 4
      %s64 = int_to_ptr.vmem [resolvable:$true] %s63
      %69 = dma.hbm_to_vmem [thread:$0]  %s4, 256, %s64, [#allocation9], 64, 64, 4
    $region21: #{fwd.1} parent=1 // pred_fallthru
      _
    // Predicated region
    $region22: #{fwd.1} parent=1 // pred_check
      _
    $region23: #{fwd.1} parent=1 // pred_check_branch
      %71 = sbr.rel (0) target = $region25
    $region24: #{fwd.1} parent=1 // pred_region
      %s73 = ssub.s32 256, 256
      %74 = vsyncadd [#allocation9], %s73
      %s75 = sshll.u32 [#allocation10], 4
      %s76 = int_to_ptr.vmem [resolvable:$true] %s75
      %81 = dma.hbm_to_vmem [thread:$0]  %s5, 256, %s76, [#allocation9], 64, 64, 4
    $region25: #{fwd.1} parent=1 // pred_fallthru
      _
    // Predicated region
    $region26: #{fwd.1} parent=1 // pred_check
      _
    $region27: #{fwd.1} parent=1 // pred_check_branch
      %83 = sbr.rel (0) target = $region29
    $region28: #{fwd.1} parent=1 // pred_region
      %s85 = ssub.s32 256, 256
      %86 = vsyncadd [#allocation12], %s85
      %s87 = sshll.u32 [#allocation11], 4
      %s88 = int_to_ptr.vmem [resolvable:$true] %s87
      %93 = dma.hbm_to_vmem [thread:$0]  %s6, 256, %s88, [#allocation12], 64, 64, 4
    $region29: #{fwd.1} parent=1 // pred_fallthru
      _
    // Predicated region
    $region30: #{fwd.1} parent=1 // pred_check
      _
    $region31: #{fwd.1} parent=1 // pred_check_branch
      %95 = sbr.rel (0) target = $region33
    $region32: #{fwd.1} parent=1 // pred_region
      _
    $region33: #{fwd.1} parent=1 // pred_fallthru
      _
    // Predicated region
    $region34: #{fwd.1} parent=1 // pred_check
      _
    $region35: #{fwd.1} parent=1 // pred_check_branch
      %97 = sbr.rel (0) target = $region37
    $region36: #{fwd.1} parent=1 // pred_region
      %s99 = ssub.s32 256, 256
      %100 = vsyncadd [#allocation12], %s99
      %s101 = sshll.u32 [#allocation13], 4
      %s102 = int_to_ptr.vmem [resolvable:$true] %s101
      %107 = dma.hbm_to_vmem [thread:$0]  %s8, 256, %s102, [#allocation12], 64, 64, 4
    $region37: #{fwd.1} parent=1 // pred_fallthru
      _
    // Predicated region
    $region38: #{fwd.1} parent=1 // pred_check
      _
    $region39: #{fwd.1} parent=1 // pred_check_branch
      %109 = sbr.rel (0) target = $region41
    $region40: #{fwd.1} parent=1 // pred_region
      %s111 = ssub.s32 512, 512
      %112 = vsyncadd [#allocation15], %s111
      %s113 = sshll.u32 [#allocation14], 4
      %s114 = int_to_ptr.vmem [resolvable:$true] %s113
      %119 = dma.hbm_to_vmem [thread:$0]  %s9, 512, %s114, [#allocation15], 64, 64, 4
    $region41: #{fwd.1} parent=1 // pred_fallthru
      _
    // Predicated region
    $region42: #{fwd.1} parent=1 // pred_check
      _
    $region43: #{fwd.1} parent=1 // pred_check_branch
      %121 = sbr.rel (0) target = $region45
    $region44: #{fwd.1} parent=1 // pred_region
      %s123 = ssub.s32 256, 256
      %124 = vsyncadd [#allocation15], %s123
      %s125 = sshll.u32 [#allocation16], 4
      %s126 = int_to_ptr.vmem [resolvable:$true] %s125
      %131 = dma.hbm_to_vmem [thread:$0]  %s10, 256, %s126, [#allocation15], 128, 128, 8
    $region45: #{fwd.1} parent=1 // pred_fallthru
      _
    // Predicated region
    $region46: #{fwd.1} parent=1 // pred_check
      _
    $region47: #{fwd.1} parent=1 // pred_check_branch
      %133 = sbr.rel (0) target = $region49
    $region48: #{fwd.1} parent=1 // pred_region
      %134 = dma.done [#allocation3], 256
    $region49: #{fwd.1} parent=1 // pred_fallthru
      _
    // Predicated region
    $region50: #{fwd.1} parent=1 // pred_check
      _
    $region51: #{fwd.1} parent=1 // pred_check_branch
      %136 = sbr.rel (0) target = $region53
    $region52: #{fwd.1} parent=1 // pred_region
      %137 = dma.done [#allocation6], 2048
    $region53: #{fwd.1} parent=1 // pred_fallthru
      _
    // Predicated region
    $region54: #{fwd.1} parent=1 // pred_check
      _
    $region55: #{fwd.1} parent=1 // pred_check_branch
      %139 = sbr.rel (0) target = $region57
    $region56: #{fwd.1} parent=1 // pred_region
      %140 = dma.done [#allocation6], 128
    $region57: #{fwd.1} parent=1 // pred_fallthru
      _
    // Predicated region
    $region58: #{fwd.1} parent=1 // pred_check
      _
    $region59: #{fwd.1} parent=1 // pred_check_branch
      %142 = sbr.rel (0) target = $region61
    $region60: #{fwd.1} parent=1 // pred_region
      %143 = dma.done [#allocation9], 256
    $region61: #{fwd.1} parent=1 // pred_fallthru
      _
    // Predicated region
    $region62: #{fwd.1} parent=1 // pred_check
      _
    $region63: #{fwd.1} parent=1 // pred_check_branch
      %145 = sbr.rel (0) target = $region65
    $region64: #{fwd.1} parent=1 // pred_region
      %146 = dma.done [#allocation9], 256
    $region65: #{fwd.1} parent=1 // pred_fallthru
      _
    // Predicated region
    $region66: #{fwd.1} parent=1 // pred_check
      _
    $region67: #{fwd.1} parent=1 // pred_check_branch
      %148 = sbr.rel (0) target = $region69
    $region68: #{fwd.1} parent=1 // pred_region
      %149 = dma.done [#allocation12], 256
    $region69: #{fwd.1} parent=1 // pred_fallthru
      _
    // Predicated region
    $region70: #{fwd.1} parent=1 // pred_check
      _
    $region71: #{fwd.1} parent=1 // pred_check_branch
      %151 = sbr.rel (0) target = $region73
    $region72: #{fwd.1} parent=1 // pred_region
      %152 = dma.done [#allocation12], 256
    $region73: #{fwd.1} parent=1 // pred_fallthru
      _
    // Predicated region
    $region74: #{fwd.1} parent=1 // pred_check
      _
    $region75: #{fwd.1} parent=1 // pred_check_branch
      %154 = sbr.rel (0) target = $region77
    $region76: #{fwd.1} parent=1 // pred_region
      %155 = dma.done [#allocation15], 512
    $region77: #{fwd.1} parent=1 // pred_fallthru
      _
    // Predicated region
    $region78: #{fwd.1} parent=1 // pred_check
      _
    $region79: #{fwd.1} parent=1 // pred_check_branch
      %157 = sbr.rel (0) target = $region81
    $region80: #{fwd.1} parent=1 // pred_region
      %158 = dma.done [#allocation15], 256
    $region81: #{fwd.1} parent=1 // pred_fallthru
      _
    %v160 = vld [vmem:[#allocation7] sm:$0xff]
    %v161 = vld [vmem:[%s0] sm:$0xff]
    %v162 = vld [vmem:[%s0 + $0x8] sm:$0xff]
    %v163 = vlaneseq
    %v164 = vand.u32 %v163, 127
    %165 = vset.pattern.permute.xlu0 0
    %166 = vperm.xlu0 %165, %v161
    %v167 = vpop.permute.xlu0 %166
    %168 = vset.pattern.permute.xlu0 0
    %169 = vperm.xlu0 %168, %v162
    %v170 = vpop.permute.xlu0 %169
    %vm171 = vcmp.eq.s32.totalorder %v167, %v164
    %vm172 = vcmp.eq.s32.totalorder %v170, %v164
    %v173 = vsel %vm171, 1, 0
    %v174 = vsel %vm172, 1, 0
    %v175 = vcvt.s32.f32 %v173
    %v176 = vcvt.s32.f32 %v174
    %v177 = vld [vmem:[#allocation5] sm:$0xff]
    %v178 = vld [vmem:[#allocation5 + $0x8] sm:$0xff]
    %v179 = vld [vmem:[#allocation5 + $0x10] sm:$0xff]
    %v180 = vld [vmem:[#allocation5 + $0x18] sm:$0xff]
    %v181 = vld [vmem:[#allocation5 + $0x20] sm:$0xff]
    %v182 = vld [vmem:[#allocation5 + $0x28] sm:$0xff]
    %v183 = vld [vmem:[#allocation5 + $0x30] sm:$0xff]
    %v184 = vld [vmem:[#allocation5 + $0x38] sm:$0xff]
    %v185 = vld [vmem:[#allocation5 + $0x40] sm:$0xff]
    %v186 = vld [vmem:[#allocation5 + $0x48] sm:$0xff]
    %v187 = vld [vmem:[#allocation5 + $0x50] sm:$0xff]
    %v188 = vld [vmem:[#allocation5 + $0x58] sm:$0xff]
    %v189 = vld [vmem:[#allocation5 + $0x60] sm:$0xff]
    %v190 = vld [vmem:[#allocation5 + $0x68] sm:$0xff]
    %v191 = vld [vmem:[#allocation5 + $0x70] sm:$0xff]
    %v192 = vld [vmem:[#allocation5 + $0x78] sm:$0xff]
    %v193 = vld [vmem:[#allocation2] sm:$0xff]
    %v194 = vld [vmem:[#allocation2 + $0x8] sm:$0xff]
    %195 = vmatprep.subr.mxu0 0.0
    %196 = vmatpush1.msra.mxu0 %v177
    %197 = vmatprep.subr.mxu0 0.0
    %198 = vmatpush1.msra.mxu0 %v178
    %199 = vmatprep.subr.mxu0 0.0
    %200 = vmatpush1.msra.mxu0 %v179
    %201 = vmatprep.subr.mxu0 0.0
    %202 = vmatpush1.msra.mxu0 %v180
    %203 = vmatprep.subr.mxu0 0.0
    %204 = vmatpush1.msra.mxu0 %v181
    %205 = vmatprep.subr.mxu0 0.0
    %206 = vmatpush1.msra.mxu0 %v182
    %207 = vmatprep.subr.mxu0 0.0
    %208 = vmatpush1.msra.mxu0 %v183
    %209 = vmatprep.subr.mxu0 0.0
    %210 = vmatpush1.msra.mxu0 %v184
    %211 = vmatprep.subr.mxu0 0.0
    %212 = vmatpush1.msra.mxu0 %v185
    %213 = vmatprep.subr.mxu0 0.0
    %214 = vmatpush1.msra.mxu0 %v186
    %215 = vmatprep.subr.mxu0 0.0
    %216 = vmatpush1.msra.mxu0 %v187
    %217 = vmatprep.subr.mxu0 0.0
    %218 = vmatpush1.msra.mxu0 %v188
    %219 = vmatprep.subr.mxu0 0.0
    %220 = vmatpush1.msra.mxu0 %v189
    %221 = vmatprep.subr.mxu0 0.0
    %222 = vmatpush1.msra.mxu0 %v190
    %223 = vmatprep.subr.mxu0 0.0
    %224 = vmatpush1.msra.mxu0 %v191
    %225 = vmatprep.subr.mxu0 0.0
    %226 = vmatpush1.msra.mxu0 %v192
    %227 = vmatprep.subr.mxu0 0.0
    %228 = vmatpush1.msra.mxu0 0.0
    %229 = vmatprep.subr.mxu0 0.0
    %230 = vmatpush1.msra.mxu0 0.0
    %231 = vmatprep.subr.mxu0 0.0
    %232 = vmatpush1.msra.mxu0 0.0
    %233 = vmatprep.subr.mxu0 0.0
    %234 = vmatpush1.msra.mxu0 0.0
    %235 = vmatprep.subr.mxu0 0.0
    %236 = vmatpush1.msra.mxu0 0.0
    %237 = vmatprep.subr.mxu0 0.0
    %238 = vmatpush1.msra.mxu0 0.0
    %239 = vmatprep.subr.mxu0 0.0
    %240 = vmatpush1.msra.mxu0 0.0
    %241 = vmatprep.subr.mxu0 0.0
    %242 = vmatpush1.msra.mxu0 0.0
    %243 = vmatprep.subr.mxu0 0.0
    %244 = vmatpush1.msra.mxu0 0.0
    %245 = vmatprep.subr.mxu0 0.0
    %246 = vmatpush1.msra.mxu0 0.0
    %247 = vmatprep.subr.mxu0 0.0
    %248 = vmatpush1.msra.mxu0 0.0
    %249 = vmatprep.subr.mxu0 0.0
    %250 = vmatpush1.msra.mxu0 0.0
    %251 = vmatprep.subr.mxu0 0.0
    %252 = vmatpush1.msra.mxu0 0.0
    %253 = vmatprep.subr.mxu0 0.0
    %254 = vmatpush1.msra.mxu0 0.0
    %255 = vmatprep.subr.mxu0 0.0
    %256 = vmatpush1.msra.mxu0 0.0
    %257 = vmatprep.subr.mxu0 0.0
    %258 = vmatpush1.msra.mxu0 0.0
    %259 = vmatprep.mubr.f32.mxu0 0.0
    %260 = vmatmul.mubr.f32.gmra.mrb[0].mxu0 %v175
    %v261 = vpop.f32.mrb[0].mxu0
    %v262 = vadd.f32 %v193, %v261
    %v263 = vpop.f32.mrb[0].mxu0
    %264 = vmatprep.mubr.f32.mxu0 0.0
    %265 = vmatmul.mubr.f32.gmra.mrb[0].mxu0 %v176
    %v266 = vpop.f32.mrb[0].mxu0
    %v267 = vadd.f32 %v194, %v266
    %v268 = vpop.f32.mrb[0].mxu0
    %269 = vdwg.mxu0
    %vm270 = vcmask 261120
    %v271 = vsel %vm270, %v262, 0.0
    %272 = vadd.xlane.f32.xlu0 %v271
    %v273 = vpop.xlane.xlu0 %272
    %v274 = vsel %vm270, %v267, 0.0
    %275 = vadd.xlane.f32.xlu0 %v274
    %v276 = vpop.xlane.xlu0 %275
    %v277 = vrcp.pop 32.0
    %v278 = vmul.f32 %v273, %v277
    %v279 = vmul.f32 %v276, %v277
    %v280 = vsub.f32 %v262, %v278
    %v281 = vsub.f32 %v267, %v279
    %v282 = vmul.f32 %v280, %v280
    %v283 = vmul.f32 %v281, %v281
    %v284 = vsel %vm270, %v282, 0.0
    %285 = vadd.xlane.f32.xlu0 %v284
    %v286 = vpop.xlane.xlu0 %285
    %v287 = vsel %vm270, %v283, 0.0
    %288 = vadd.xlane.f32.xlu0 %v287
    %v289 = vpop.xlane.xlu0 %288
    %v290 = vmul.f32 %v286, %v277
    %v291 = vmul.f32 %v289, %v277
    %v292 = vadd.f32 %v290, 1e-05
    %v293 = vadd.f32 %v291, 1e-05
    %v294 = vrsqrt.pop %v292
    %v295 = vrsqrt.pop %v293
    %v296 = vmul.f32 %v280, %v294
    %v297 = vmul.f32 %v281, %v295
    %v298 = vlaneseq
    %v299 = vshrl.u32 %v298, 7
    %v300 = vsub.s32 0, %v299
    %v301 = vrot.slane %v160, %v300
    %v302 = vmul.f32 %v296, %v301
    %v303 = vmul.f32 %v297, %v301
    %v304 = vlaneseq
    %v305 = vshrl.u32 %v304, 7
    %v306 = vsub.s32 1, %v305
    %v307 = vrot.slane %v160, %v306
    %v308 = vadd.f32 %v302, %v307
    %v309 = vadd.f32 %v303, %v307
    %v310 = vpack.c.bf16 %v309, %v308
    %v311 = vld [vmem:[#allocation8] sm:$0xf]
    %v312 = vld [vmem:[#allocation8 + $0x4] sm:$0xf]
    %v313 = vld [vmem:[#allocation8 + $0x8] sm:$0xf]
    %v314 = vld [vmem:[#allocation8 + $0xc] sm:$0xf]
    %v319 = vunpack.c.l.b16 %v311
    %v320 = vunpack.c.l.b16 %v312
    %v321 = vunpack.c.l.b16 %v313
    %v322 = vunpack.c.l.b16 %v314
    %v323 = vpack.c.b16 %v320, %v319
    %v324 = vpack.c.b16 %v322, %v321
    %v328 = vsel %vm270, %v310, 0
    %330 = vmatprep.subr.bf16.mxu0 0
    %331 = vmatpush1.bf16.msra.mxu0 %v323
    %332 = vmatprep.subr.bf16.mxu0 0
    %333 = vmatpush1.bf16.msra.mxu0 %v324
    %334 = vmatprep.subr.bf16.mxu0 0
    %335 = vmatpush1.bf16.msra.mxu0 0
    %336 = vmatprep.subr.bf16.mxu0 0
    %337 = vmatpush1.bf16.msra.mxu0 0
    %338 = vmatprep.subr.bf16.mxu0 0
    %339 = vmatpush1.bf16.msra.mxu0 0
    %340 = vmatprep.subr.bf16.mxu0 0
    %341 = vmatpush1.bf16.msra.mxu0 0
    %342 = vmatprep.subr.bf16.mxu0 0
    %343 = vmatpush1.bf16.msra.mxu0 0
    %344 = vmatprep.subr.bf16.mxu0 0
    %345 = vmatpush1.bf16.msra.mxu0 0
    %346 = vmatprep.subr.bf16.mxu0 0
    %347 = vmatpush1.bf16.msra.mxu0 0
    %348 = vmatprep.subr.bf16.mxu0 0
    %349 = vmatpush1.bf16.msra.mxu0 0
    %350 = vmatprep.subr.bf16.mxu0 0
    %351 = vmatpush1.bf16.msra.mxu0 0
    %352 = vmatprep.subr.bf16.mxu0 0
    %353 = vmatpush1.bf16.msra.mxu0 0
    %354 = vmatprep.subr.bf16.mxu0 0
    %355 = vmatpush1.bf16.msra.mxu0 0
    %356 = vmatprep.subr.bf16.mxu0 0
    %357 = vmatpush1.bf16.msra.mxu0 0
    %358 = vmatprep.subr.bf16.mxu0 0
    %359 = vmatpush1.bf16.msra.mxu0 0
    %360 = vmatprep.subr.bf16.mxu0 0
    %361 = vmatpush1.bf16.msra.mxu0 0
    %362 = vmatprep.mubr.bf16.mxu0 0
    %363 = vmatmul.mubr.bf16.gmra.mrb[0].mxu0 %v328
    %v364 = vpop.f32.mrb[0].mxu0
    %v365 = vadd.f32 0.0, %v364
    %v366 = vpop.f32.mrb[0].mxu0
    %v367 = vpop.f32.mrb[0].mxu0
    %v368 = vadd.f32 0.0, %v367
    %v369 = vpop.f32.mrb[0].mxu0
    %370 = vdwg.mxu0
    %v371 = vld [vmem:[#allocation14] sm:$0xf]
    %v372 = vld [vmem:[#allocation14 + $0x4] sm:$0xf]
    %v373 = vld [vmem:[#allocation14 + $0x8] sm:$0xf]
    %v374 = vld [vmem:[#allocation14 + $0xc] sm:$0xf]
    %v375 = vld [vmem:[#allocation14 + $0x10] sm:$0xf]
    %v376 = vld [vmem:[#allocation14 + $0x14] sm:$0xf]
    %v377 = vld [vmem:[#allocation14 + $0x18] sm:$0xf]
    %v378 = vld [vmem:[#allocation14 + $0x1c] sm:$0xf]
    %v379 = vpack.c.bf16 %v368, %v365
    %v388 = vunpack.c.l.b16 %v371
    %v389 = vunpack.c.l.b16 %v372
    %v390 = vunpack.c.l.b16 %v373
    %v391 = vunpack.c.l.b16 %v374
    %v392 = vunpack.c.l.b16 %v375
    %v393 = vunpack.c.l.b16 %v376
    %v394 = vunpack.c.l.b16 %v377
    %v395 = vunpack.c.l.b16 %v378
    %v396 = vpack.c.b16 %v389, %v388
    %v397 = vpack.c.b16 %v391, %v390
    %v398 = vpack.c.b16 %v393, %v392
    %v399 = vpack.c.b16 %v395, %v394
    %400 = vrot.lane.b32.xlu0 %v396, 32
    %v401 = vpop.permute.xlu0 %400
    %402 = vrot.lane.b32.xlu0 %v397, 32
    %v403 = vpop.permute.xlu0 %402
    %404 = vrot.lane.b32.xlu0 %v398, 32
    %v405 = vpop.permute.xlu0 %404
    %406 = vrot.lane.b32.xlu0 %v399, 32
    %v407 = vpop.permute.xlu0 %406
    %v412 = vmul.bf16 %v379, %v401
    %v413 = vmul.bf16 %v379, %v403
    %v414 = vmul.bf16 %v379, %v405
    %v415 = vmul.bf16 %v379, %v407
    %416 = vrot.lane.b32.xlu0 %v396, 64
    %v417 = vpop.permute.xlu0 %416
    %418 = vrot.lane.b32.xlu0 %v397, 64
    %v419 = vpop.permute.xlu0 %418
    %420 = vrot.lane.b32.xlu0 %v398, 64
    %v421 = vpop.permute.xlu0 %420
    %422 = vrot.lane.b32.xlu0 %v399, 64
    %v423 = vpop.permute.xlu0 %422
    %v428 = vmul.bf16 %v379, %v417
    %v429 = vmul.bf16 %v379, %v419
    %v430 = vmul.bf16 %v379, %v421
    %v431 = vmul.bf16 %v379, %v423
    %436 = vrot.lane.b32.xlu0 %v412, 96
    %v437 = vpop.permute.xlu0 %436
    %438 = vrot.lane.b32.xlu0 %v413, 96
    %v439 = vpop.permute.xlu0 %438
    %440 = vrot.lane.b32.xlu0 %v414, 96
    %v441 = vpop.permute.xlu0 %440
    %442 = vrot.lane.b32.xlu0 %v415, 96
    %v443 = vpop.permute.xlu0 %442
    %v445 = vsel %vm270, %v379, 0
    %v448 = vsel %vm270, %v437, 0
    %v451 = vsel %vm270, %v439, 0
    %v454 = vsel %vm270, %v441, 0
    %v457 = vsel %vm270, %v443, 0
    %459 = vmatprep.subr.bf16.mxu0 0
    %460 = vmatpush1.bf16.xpose.msra.mxu0 %v448
    %461 = vmatprep.subr.bf16.mxu0 0
    %462 = vmatpush1.bf16.xpose.msra.mxu0 %v451
    %463 = vmatprep.subr.bf16.mxu0 0
    %464 = vmatpush1.bf16.xpose.msra.mxu0 %v454
    %465 = vmatprep.subr.bf16.mxu0 0
    %466 = vmatpush1.bf16.xpose.msra.mxu0 %v457
    %467 = vmatprep.subr.bf16.mxu0 0
    %468 = vmatpush1.bf16.xpose.msra.mxu0 0
    %469 = vmatprep.subr.bf16.mxu0 0
    %470 = vmatpush1.bf16.xpose.msra.mxu0 0
    %471 = vmatprep.subr.bf16.mxu0 0
    %472 = vmatpush1.bf16.xpose.msra.mxu0 0
    %473 = vmatprep.subr.bf16.mxu0 0
    %474 = vmatpush1.bf16.xpose.msra.mxu0 0
    %475 = vmatprep.subr.bf16.mxu0 0
    %476 = vmatpush1.bf16.xpose.msra.mxu0 0
    %477 = vmatprep.subr.bf16.mxu0 0
    %478 = vmatpush1.bf16.xpose.msra.mxu0 0
    %479 = vmatprep.subr.bf16.mxu0 0
    %480 = vmatpush1.bf16.xpose.msra.mxu0 0
    %481 = vmatprep.subr.bf16.mxu0 0
    %482 = vmatpush1.bf16.xpose.msra.mxu0 0
    %483 = vmatprep.subr.bf16.mxu0 0
    %484 = vmatpush1.bf16.xpose.msra.mxu0 0
    %485 = vmatprep.subr.bf16.mxu0 0
    %486 = vmatpush1.bf16.xpose.msra.mxu0 0
    %487 = vmatprep.subr.bf16.mxu0 0
    %488 = vmatpush1.bf16.xpose.msra.mxu0 0
    %489 = vmatprep.subr.bf16.mxu0 0
    %490 = vmatpush1.bf16.xpose.msra.mxu0 0
    %491 = vmatprep.mubr.bf16.mxu0 0
    %492 = vmatmul.mubr.bf16.gmra.mrb[0].mxu0 %v445
    %v493 = vpop.f32.mrb[0].mxu0
    %v494 = vadd.f32 0.0, %v493
    %v495 = vpop.f32.mrb[0].mxu0
    %v496 = vpop.f32.mrb[0].mxu0
    %v497 = vadd.f32 0.0, %v496
    %v498 = vpop.f32.mrb[0].mxu0
    %499 = vdwg.mxu0
    %v500 = vmul.f32 %v494, 0.35355338
    %v501 = vmul.f32 %v497, 0.35355338
    %v502 = vld [vmem:[#allocation16] sm:$0xff]
    %v503 = vld [vmem:[#allocation16 + $0x8] sm:$0xff]
    %v504 = vadd.f32 %v500, %v502
    %v505 = vadd.f32 %v501, %v503
    %vm506 = vcmask 523264
    %v507 = vsel %vm506, %v504, -inf
    %508 = vmax.xlane.f32.xlu0 %v507
    %v509 = vpop.xlane.xlu0 %508
    %v510 = vsel %vm506, %v505, -inf
    %511 = vmax.xlane.f32.xlu0 %v510
    %v512 = vpop.xlane.xlu0 %511
    %v513 = vsub.f32 %v504, %v509
    %v514 = vsub.f32 %v505, %v512
    %v515 = vmul.f32 %v513, 1.442695
    %v516 = vpow.pop %v515
    %v517 = vmul.f32 %v514, 1.442695
    %v518 = vpow.pop %v517
    %v519 = vpack.c.bf16 %v518, %v516
    %524 = vrot.lane.b32.xlu0 %v428, 64
    %v525 = vpop.permute.xlu0 %524
    %526 = vrot.lane.b32.xlu0 %v429, 64
    %v527 = vpop.permute.xlu0 %526
    %528 = vrot.lane.b32.xlu0 %v430, 64
    %v529 = vpop.permute.xlu0 %528
    %530 = vrot.lane.b32.xlu0 %v431, 64
    %v531 = vpop.permute.xlu0 %530
    %v537 = vsel %vm506, %v519, 0
    %539 = vmatprep.subr.bf16.mxu0 0
    %540 = vmatpush1.bf16.msra.mxu0 %v525
    %541 = vmatprep.subr.bf16.mxu0 0
    %542 = vmatpush1.bf16.msra.mxu0 %v527
    %543 = vmatprep.subr.bf16.mxu0 0
    %544 = vmatpush1.bf16.msra.mxu0 %v529
    %545 = vmatprep.subr.bf16.mxu0 0
    %546 = vmatpush1.bf16.msra.mxu0 %v531
    %547 = vmatprep.subr.bf16.mxu0 0
    %548 = vmatpush1.bf16.msra.mxu0 0
    %549 = vmatprep.subr.bf16.mxu0 0
    %550 = vmatpush1.bf16.msra.mxu0 0
    %551 = vmatprep.subr.bf16.mxu0 0
    %552 = vmatpush1.bf16.msra.mxu0 0
    %553 = vmatprep.subr.bf16.mxu0 0
    %554 = vmatpush1.bf16.msra.mxu0 0
    %555 = vmatprep.subr.bf16.mxu0 0
    %556 = vmatpush1.bf16.msra.mxu0 0
    %557 = vmatprep.subr.bf16.mxu0 0
    %558 = vmatpush1.bf16.msra.mxu0 0
    %559 = vmatprep.subr.bf16.mxu0 0
    %560 = vmatpush1.bf16.msra.mxu0 0
    %561 = vmatprep.subr.bf16.mxu0 0
    %562 = vmatpush1.bf16.msra.mxu0 0
    %563 = vmatprep.subr.bf16.mxu0 0
    %564 = vmatpush1.bf16.msra.mxu0 0
    %565 = vmatprep.subr.bf16.mxu0 0
    %566 = vmatpush1.bf16.msra.mxu0 0
    %567 = vmatprep.subr.bf16.mxu0 0
    %568 = vmatpush1.bf16.msra.mxu0 0
    %569 = vmatprep.subr.bf16.mxu0 0
    %570 = vmatpush1.bf16.msra.mxu0 0
    %571 = vmatprep.mubr.bf16.mxu0 0
    %572 = vmatmul.mubr.bf16.gmra.mrb[0].mxu0 %v537
    %v573 = vpop.f32.mrb[0].mxu0
    %v574 = vadd.f32 0.0, %v573
    %v575 = vpop.f32.mrb[0].mxu0
    %v576 = vpop.f32.mrb[0].mxu0
    %v577 = vadd.f32 0.0, %v576
    %v578 = vpop.f32.mrb[0].mxu0
    %579 = vdwg.mxu0
    %v580 = vunpack.c.l.bf16 %v371
    %v581 = vunpack.c.l.bf16 %v372
    %v582 = vunpack.c.l.bf16 %v373
    %v583 = vunpack.c.l.bf16 %v374
    %v584 = vunpack.c.l.bf16 %v375
    %v585 = vunpack.c.l.bf16 %v376
    %v586 = vunpack.c.l.bf16 %v377
    %v587 = vunpack.c.l.bf16 %v378
    %v589 = vsel %vm506, %v516, 0
    %v592 = vsel %vm506, %v518, 0
    %594 = vmatprep.subr.mxu0 0.0
    %595 = vmatpush1.msra.mxu0 %v580
    %596 = vmatprep.subr.mxu0 0.0
    %597 = vmatpush1.msra.mxu0 %v581
    %598 = vmatprep.subr.mxu0 0.0
    %599 = vmatpush1.msra.mxu0 %v582
    %600 = vmatprep.subr.mxu0 0.0
    %601 = vmatpush1.msra.mxu0 %v583
    %602 = vmatprep.subr.mxu0 0.0
    %603 = vmatpush1.msra.mxu0 %v584
    %604 = vmatprep.subr.mxu0 0.0
    %605 = vmatpush1.msra.mxu0 %v585
    %606 = vmatprep.subr.mxu0 0.0
    %607 = vmatpush1.msra.mxu0 %v586
    %608 = vmatprep.subr.mxu0 0.0
    %609 = vmatpush1.msra.mxu0 %v587
    %610 = vmatprep.subr.mxu0 0.0
    %611 = vmatpush1.msra.mxu0 0.0
    %612 = vmatprep.subr.mxu0 0.0
    %613 = vmatpush1.msra.mxu0 0.0
    %614 = vmatprep.subr.mxu0 0.0
    %615 = vmatpush1.msra.mxu0 0.0
    %616 = vmatprep.subr.mxu0 0.0
    %617 = vmatpush1.msra.mxu0 0.0
    %618 = vmatprep.subr.mxu0 0.0
    %619 = vmatpush1.msra.mxu0 0.0
    %620 = vmatprep.subr.mxu0 0.0
    %621 = vmatpush1.msra.mxu0 0.0
    %622 = vmatprep.subr.mxu0 0.0
    %623 = vmatpush1.msra.mxu0 0.0
    %624 = vmatprep.subr.mxu0 0.0
    %625 = vmatpush1.msra.mxu0 0.0
    %626 = vmatprep.subr.mxu0 0.0
    %627 = vmatpush1.msra.mxu0 0.0
    %628 = vmatprep.subr.mxu0 0.0
    %629 = vmatpush1.msra.mxu0 0.0
    %630 = vmatprep.subr.mxu0 0.0
    %631 = vmatpush1.msra.mxu0 0.0
    %632 = vmatprep.subr.mxu0 0.0
    %633 = vmatpush1.msra.mxu0 0.0
    %634 = vmatprep.subr.mxu0 0.0
    %635 = vmatpush1.msra.mxu0 0.0
    %636 = vmatprep.subr.mxu0 0.0
    %637 = vmatpush1.msra.mxu0 0.0
    %638 = vmatprep.subr.mxu0 0.0
    %639 = vmatpush1.msra.mxu0 0.0
    %640 = vmatprep.subr.mxu0 0.0
    %641 = vmatpush1.msra.mxu0 0.0
    %642 = vmatprep.subr.mxu0 0.0
    %643 = vmatpush1.msra.mxu0 0.0
    %644 = vmatprep.subr.mxu0 0.0
    %645 = vmatpush1.msra.mxu0 0.0
    %646 = vmatprep.subr.mxu0 0.0
    %647 = vmatpush1.msra.mxu0 0.0
    %648 = vmatprep.subr.mxu0 0.0
    %649 = vmatpush1.msra.mxu0 0.0
    %650 = vmatprep.subr.mxu0 0.0
    %651 = vmatpush1.msra.mxu0 0.0
    %652 = vmatprep.subr.mxu0 0.0
    %653 = vmatpush1.msra.mxu0 0.0
    %654 = vmatprep.subr.mxu0 0.0
    %655 = vmatpush1.msra.mxu0 0.0
    %656 = vmatprep.subr.mxu0 0.0
    %657 = vmatpush1.msra.mxu0 0.0
    %658 = vmatprep.mubr.f32.mxu0 0.0
    %659 = vmatmul.mubr.f32.gmra.mrb[0].mxu0 %v589
    %v660 = vpop.f32.mrb[0].mxu0
    %v661 = vadd.f32 0.0, %v660
    %v662 = vpop.f32.mrb[0].mxu0
    %663 = vmatprep.mubr.f32.mxu0 0.0
    %664 = vmatmul.mubr.f32.gmra.mrb[0].mxu0 %v592
    %v665 = vpop.f32.mrb[0].mxu0
    %v666 = vadd.f32 0.0, %v665
    %v667 = vpop.f32.mrb[0].mxu0
    %668 = vdwg.mxu0
    %v669 = vmax.f32 %v661, 1e-30
    %v670 = vmax.f32 %v666, 1e-30
    %v671 = vrcp.pop %v669
    %v672 = vrcp.pop %v670
    %v673 = vmul.f32 %v574, %v671
    %v674 = vmul.f32 %v577, %v672
    %v675 = vpack.c.bf16 %v674, %v673
    %v676 = vld [vmem:[#allocation10] sm:$0xf]
    %v677 = vld [vmem:[#allocation10 + $0x4] sm:$0xf]
    %v678 = vld [vmem:[#allocation10 + $0x8] sm:$0xf]
    %v679 = vld [vmem:[#allocation10 + $0xc] sm:$0xf]
    %v680 = vlaneseq
    %v681 = vshrl.u32 %v680, 7
    %v682 = vsub.s32 2, %v681
    %v683 = vrot.slane %v160, %v682
    %v688 = vunpack.c.l.b16 %v676
    %v689 = vunpack.c.l.b16 %v677
    %v690 = vunpack.c.l.b16 %v678
    %v691 = vunpack.c.l.b16 %v679
    %v692 = vpack.c.b16 %v689, %v688
    %v693 = vpack.c.b16 %v691, %v690
    %v697 = vsel %vm270, %v675, 0
    %699 = vmatprep.subr.bf16.mxu0 0
    %700 = vmatpush1.bf16.msra.mxu0 %v692
    %701 = vmatprep.subr.bf16.mxu0 0
    %702 = vmatpush1.bf16.msra.mxu0 %v693
    %703 = vmatprep.subr.bf16.mxu0 0
    %704 = vmatpush1.bf16.msra.mxu0 0
    %705 = vmatprep.subr.bf16.mxu0 0
    %706 = vmatpush1.bf16.msra.mxu0 0
    %707 = vmatprep.subr.bf16.mxu0 0
    %708 = vmatpush1.bf16.msra.mxu0 0
    %709 = vmatprep.subr.bf16.mxu0 0
    %710 = vmatpush1.bf16.msra.mxu0 0
    %711 = vmatprep.subr.bf16.mxu0 0
    %712 = vmatpush1.bf16.msra.mxu0 0
    %713 = vmatprep.subr.bf16.mxu0 0
    %714 = vmatpush1.bf16.msra.mxu0 0
    %715 = vmatprep.subr.bf16.mxu0 0
    %716 = vmatpush1.bf16.msra.mxu0 0
    %717 = vmatprep.subr.bf16.mxu0 0
    %718 = vmatpush1.bf16.msra.mxu0 0
    %719 = vmatprep.subr.bf16.mxu0 0
    %720 = vmatpush1.bf16.msra.mxu0 0
    %721 = vmatprep.subr.bf16.mxu0 0
    %722 = vmatpush1.bf16.msra.mxu0 0
    %723 = vmatprep.subr.bf16.mxu0 0
    %724 = vmatpush1.bf16.msra.mxu0 0
    %725 = vmatprep.subr.bf16.mxu0 0
    %726 = vmatpush1.bf16.msra.mxu0 0
    %727 = vmatprep.subr.bf16.mxu0 0
    %728 = vmatpush1.bf16.msra.mxu0 0
    %729 = vmatprep.subr.bf16.mxu0 0
    %730 = vmatpush1.bf16.msra.mxu0 0
    %731 = vmatprep.mubr.bf16.mxu0 0
    %732 = vmatmul.mubr.bf16.gmra.mrb[0].mxu0 %v697
    %v733 = vpop.f32.mrb[0].mxu0
    %v734 = vadd.f32 %v683, %v733
    %v735 = vpop.f32.mrb[0].mxu0
    %v736 = vpop.f32.mrb[0].mxu0
    %v737 = vadd.f32 %v683, %v736
    %v738 = vpop.f32.mrb[0].mxu0
    %739 = vdwg.mxu0
    %v740 = vadd.f32 %v262, %v734
    %v741 = vadd.f32 %v267, %v737
    %v742 = vsel %vm270, %v740, 0.0
    %743 = vadd.xlane.f32.xlu0 %v742
    %v744 = vpop.xlane.xlu0 %743
    %v745 = vsel %vm270, %v741, 0.0
    %746 = vadd.xlane.f32.xlu0 %v745
    %v747 = vpop.xlane.xlu0 %746
    %v748 = vmul.f32 %v744, %v277
    %v749 = vmul.f32 %v747, %v277
    %v750 = vsub.f32 %v740, %v748
    %v751 = vsub.f32 %v741, %v749
    %v752 = vmul.f32 %v750, %v750
    %v753 = vmul.f32 %v751, %v751
    %v754 = vsel %vm270, %v752, 0.0
    %755 = vadd.xlane.f32.xlu0 %v754
    %v756 = vpop.xlane.xlu0 %755
    %v757 = vsel %vm270, %v753, 0.0
    %758 = vadd.xlane.f32.xlu0 %v757
    %v759 = vpop.xlane.xlu0 %758
    %v760 = vmul.f32 %v756, %v277
    %v761 = vmul.f32 %v759, %v277
    %v762 = vadd.f32 %v760, 1e-05
    %v763 = vadd.f32 %v761, 1e-05
    %v764 = vrsqrt.pop %v762
    %v765 = vrsqrt.pop %v763
    %v766 = vmul.f32 %v750, %v764
    %v767 = vmul.f32 %v751, %v765
    %v768 = vlaneseq
    %v769 = vshrl.u32 %v768, 7
    %v770 = vsub.s32 3, %v769
    %v771 = vrot.slane %v160, %v770
    %v772 = vmul.f32 %v766, %v771
    %v773 = vmul.f32 %v767, %v771
    %v774 = vlaneseq
    %v775 = vshrl.u32 %v774, 7
    %v776 = vsub.s32 4, %v775
    %v777 = vrot.slane %v160, %v776
    %v778 = vadd.f32 %v772, %v777
    %v779 = vadd.f32 %v773, %v777
    %v780 = vpack.c.bf16 %v779, %v778
    %v781 = vld [vmem:[#allocation11] sm:$0xf]
    %v782 = vld [vmem:[#allocation11 + $0x4] sm:$0xf]
    %v783 = vld [vmem:[#allocation11 + $0x8] sm:$0xf]
    %v784 = vld [vmem:[#allocation11 + $0xc] sm:$0xf]
    %v785 = vlaneseq
    %v786 = vshrl.u32 %v785, 7
    %v787 = vsub.s32 6, %v786
    %v788 = vrot.slane %v160, %v787
    %v793 = vunpack.c.l.b16 %v781
    %v794 = vunpack.c.l.b16 %v782
    %v795 = vunpack.c.l.b16 %v783
    %v796 = vunpack.c.l.b16 %v784
    %v797 = vpack.c.b16 %v794, %v793
    %v798 = vpack.c.b16 %v796, %v795
    %v802 = vsel %vm270, %v780, 0
    %804 = vmatprep.subr.bf16.mxu0 0
    %805 = vmatpush1.bf16.msra.mxu0 %v797
    %806 = vmatprep.subr.bf16.mxu0 0
    %807 = vmatpush1.bf16.msra.mxu0 %v798
    %808 = vmatprep.subr.bf16.mxu0 0
    %809 = vmatpush1.bf16.msra.mxu0 0
    %810 = vmatprep.subr.bf16.mxu0 0
    %811 = vmatpush1.bf16.msra.mxu0 0
    %812 = vmatprep.subr.bf16.mxu0 0
    %813 = vmatpush1.bf16.msra.mxu0 0
    %814 = vmatprep.subr.bf16.mxu0 0
    %815 = vmatpush1.bf16.msra.mxu0 0
    %816 = vmatprep.subr.bf16.mxu0 0
    %817 = vmatpush1.bf16.msra.mxu0 0
    %818 = vmatprep.subr.bf16.mxu0 0
    %819 = vmatpush1.bf16.msra.mxu0 0
    %820 = vmatprep.subr.bf16.mxu0 0
    %821 = vmatpush1.bf16.msra.mxu0 0
    %822 = vmatprep.subr.bf16.mxu0 0
    %823 = vmatpush1.bf16.msra.mxu0 0
    %824 = vmatprep.subr.bf16.mxu0 0
    %825 = vmatpush1.bf16.msra.mxu0 0
    %826 = vmatprep.subr.bf16.mxu0 0
    %827 = vmatpush1.bf16.msra.mxu0 0
    %828 = vmatprep.subr.bf16.mxu0 0
    %829 = vmatpush1.bf16.msra.mxu0 0
    %830 = vmatprep.subr.bf16.mxu0 0
    %831 = vmatpush1.bf16.msra.mxu0 0
    %832 = vmatprep.subr.bf16.mxu0 0
    %833 = vmatpush1.bf16.msra.mxu0 0
    %834 = vmatprep.subr.bf16.mxu0 0
    %835 = vmatpush1.bf16.msra.mxu0 0
    %836 = vmatprep.mubr.bf16.mxu0 0
    %837 = vmatmul.mubr.bf16.gmra.mrb[0].mxu0 %v802
    %v838 = vpop.f32.mrb[0].mxu0
    %v839 = vadd.f32 %v788, %v838
    %v840 = vpop.f32.mrb[0].mxu0
    %v841 = vpop.f32.mrb[0].mxu0
    %v842 = vadd.f32 %v788, %v841
    %v843 = vpop.f32.mrb[0].mxu0
    %844 = vdwg.mxu0
    %v845 = vmax.f32 %v839, 0.0
    %v846 = vmax.f32 %v842, 0.0
    %v847 = vpack.c.bf16 %v846, %v845
    %v848 = vld [vmem:[%s7] sm:$0xf]
    %v849 = vld [vmem:[%s7 + $0x4] sm:$0xf]
    %v850 = vld [vmem:[%s7 + $0x8] sm:$0xf]
    %v851 = vld [vmem:[%s7 + $0xc] sm:$0xf]
    %v852 = vld [vmem:[%s7 + $0x10] sm:$0xf]
    %v853 = vld [vmem:[%s7 + $0x14] sm:$0xf]
    %v854 = vld [vmem:[%s7 + $0x18] sm:$0xf]
    %v855 = vld [vmem:[%s7 + $0x1c] sm:$0xf]
    %v856 = vld [vmem:[%s7 + $0x20] sm:$0xf]
    %v857 = vld [vmem:[%s7 + $0x24] sm:$0xf]
    %v858 = vld [vmem:[%s7 + $0x28] sm:$0xf]
    %v859 = vld [vmem:[%s7 + $0x2c] sm:$0xf]
    %v860 = vld [vmem:[%s7 + $0x30] sm:$0xf]
    %v861 = vld [vmem:[%s7 + $0x34] sm:$0xf]
    %v862 = vld [vmem:[%s7 + $0x38] sm:$0xf]
    %v863 = vld [vmem:[%s7 + $0x3c] sm:$0xf]
    %v864 = vlaneseq
    %v865 = vshrl.u32 %v864, 7
    %v866 = vsub.s32 5, %v865
    %v867 = vrot.slane %v160, %v866
    %v884 = vunpack.c.l.b16 %v848
    %v885 = vunpack.c.l.b16 %v849
    %v886 = vunpack.c.l.b16 %v850
    %v887 = vunpack.c.l.b16 %v851
    %v888 = vunpack.c.l.b16 %v852
    %v889 = vunpack.c.l.b16 %v853
    %v890 = vunpack.c.l.b16 %v854
    %v891 = vunpack.c.l.b16 %v855
    %v892 = vunpack.c.l.b16 %v856
    %v893 = vunpack.c.l.b16 %v857
    %v894 = vunpack.c.l.b16 %v858
    %v895 = vunpack.c.l.b16 %v859
    %v896 = vunpack.c.l.b16 %v860
    %v897 = vunpack.c.l.b16 %v861
    %v898 = vunpack.c.l.b16 %v862
    %v899 = vunpack.c.l.b16 %v863
    %v900 = vpack.c.b16 %v885, %v884
    %v901 = vpack.c.b16 %v887, %v886
    %v902 = vpack.c.b16 %v889, %v888
    %v903 = vpack.c.b16 %v891, %v890
    %v904 = vpack.c.b16 %v893, %v892
    %v905 = vpack.c.b16 %v895, %v894
    %v906 = vpack.c.b16 %v897, %v896
    %v907 = vpack.c.b16 %v899, %v898
    %916 = vmatprep.subr.bf16.mxu0 0
    %917 = vmatpush1.bf16.msra.mxu0 %v900
    %918 = vmatprep.subr.bf16.mxu0 0
    %919 = vmatpush1.bf16.msra.mxu0 %v901
    %920 = vmatprep.subr.bf16.mxu0 0
    %921 = vmatpush1.bf16.msra.mxu0 %v902
    %922 = vmatprep.subr.bf16.mxu0 0
    %923 = vmatpush1.bf16.msra.mxu0 %v903
    %924 = vmatprep.subr.bf16.mxu0 0
    %925 = vmatpush1.bf16.msra.mxu0 %v904
    %926 = vmatprep.subr.bf16.mxu0 0
    %927 = vmatpush1.bf16.msra.mxu0 %v905
    %928 = vmatprep.subr.bf16.mxu0 0
    %929 = vmatpush1.bf16.msra.mxu0 %v906
    %930 = vmatprep.subr.bf16.mxu0 0
    %931 = vmatpush1.bf16.msra.mxu0 %v907
    %932 = vmatprep.subr.bf16.mxu0 0
    %933 = vmatpush1.bf16.msra.mxu0 0
    %934 = vmatprep.subr.bf16.mxu0 0
    %935 = vmatpush1.bf16.msra.mxu0 0
    %936 = vmatprep.subr.bf16.mxu0 0
    %937 = vmatpush1.bf16.msra.mxu0 0
    %938 = vmatprep.subr.bf16.mxu0 0
    %939 = vmatpush1.bf16.msra.mxu0 0
    %940 = vmatprep.subr.bf16.mxu0 0
    %941 = vmatpush1.bf16.msra.mxu0 0
    %942 = vmatprep.subr.bf16.mxu0 0
    %943 = vmatpush1.bf16.msra.mxu0 0
    %944 = vmatprep.subr.bf16.mxu0 0
    %945 = vmatpush1.bf16.msra.mxu0 0
    %946 = vmatprep.subr.bf16.mxu0 0
    %947 = vmatpush1.bf16.msra.mxu0 0
    %948 = vmatprep.mubr.bf16.mxu0 0
    %949 = vmatmul.mubr.bf16.gmra.mrb[0].mxu0 %v847
    %v950 = vpop.f32.mrb[0].mxu0
    %v951 = vadd.f32 %v867, %v950
    %v952 = vpop.f32.mrb[0].mxu0
    %v953 = vpop.f32.mrb[0].mxu0
    %v954 = vadd.f32 %v867, %v953
    %v955 = vpop.f32.mrb[0].mxu0
    %956 = vdwg.mxu0
    %v957 = vadd.f32 %v740, %v951
    %v958 = vadd.f32 %v741, %v954
    %v959 = vpack.c.bf16 %v958, %v957
    %v960 = vld [vmem:[#allocation13] sm:$0xf]
    %v961 = vld [vmem:[#allocation13 + $0x4] sm:$0xf]
    %v962 = vld [vmem:[#allocation13 + $0x8] sm:$0xf]
    %v963 = vld [vmem:[#allocation13 + $0xc] sm:$0xf]
    %v964 = vlaneseq
    %v965 = vshrl.u32 %v964, 7
    %v966 = vsub.s32 7, %v965
    %v967 = vrot.slane %v160, %v966
    %v972 = vunpack.c.l.b16 %v960
    %v973 = vunpack.c.l.b16 %v961
    %v974 = vunpack.c.l.b16 %v962
    %v975 = vunpack.c.l.b16 %v963
    %v976 = vpack.c.b16 %v973, %v972
    %v977 = vpack.c.b16 %v975, %v974
    %v981 = vsel %vm270, %v959, 0
    %983 = vmatprep.subr.bf16.mxu0 0
    %984 = vmatpush1.bf16.msra.mxu0 %v976
    %985 = vmatprep.subr.bf16.mxu0 0
    %986 = vmatpush1.bf16.msra.mxu0 %v977
    %987 = vmatprep.subr.bf16.mxu0 0
    %988 = vmatpush1.bf16.msra.mxu0 0
    %989 = vmatprep.subr.bf16.mxu0 0
    %990 = vmatpush1.bf16.msra.mxu0 0
    %991 = vmatprep.subr.bf16.mxu0 0
    %992 = vmatpush1.bf16.msra.mxu0 0
    %993 = vmatprep.subr.bf16.mxu0 0
    %994 = vmatpush1.bf16.msra.mxu0 0
    %995 = vmatprep.subr.bf16.mxu0 0
    %996 = vmatpush1.bf16.msra.mxu0 0
    %997 = vmatprep.subr.bf16.mxu0 0
    %998 = vmatpush1.bf16.msra.mxu0 0
    %999 = vmatprep.subr.bf16.mxu0 0
    %1000 = vmatpush1.bf16.msra.mxu0 0
    %1001 = vmatprep.subr.bf16.mxu0 0
    %1002 = vmatpush1.bf16.msra.mxu0 0
    %1003 = vmatprep.subr.bf16.mxu0 0
    %1004 = vmatpush1.bf16.msra.mxu0 0
    %1005 = vmatprep.subr.bf16.mxu0 0
    %1006 = vmatpush1.bf16.msra.mxu0 0
    %1007 = vmatprep.subr.bf16.mxu0 0
    %1008 = vmatpush1.bf16.msra.mxu0 0
    %1009 = vmatprep.subr.bf16.mxu0 0
    %1010 = vmatpush1.bf16.msra.mxu0 0
    %1011 = vmatprep.subr.bf16.mxu0 0
    %1012 = vmatpush1.bf16.msra.mxu0 0
    %1013 = vmatprep.subr.bf16.mxu0 0
    %1014 = vmatpush1.bf16.msra.mxu0 0
    %1015 = vmatprep.mubr.bf16.mxu0 0
    %1016 = vmatmul.mubr.bf16.gmra.mrb[0].mxu0 %v981
    %v1017 = vpop.f32.mrb[0].mxu0
    %v1018 = vadd.f32 %v967, %v1017
    %v1019 = vpop.f32.mrb[0].mxu0
    %v1020 = vpop.f32.mrb[0].mxu0
    %v1021 = vadd.f32 %v967, %v1020
    %v1022 = vpop.f32.mrb[0].mxu0
    %1023 = vdwg.mxu0
    %1024 = vst [vmem:[#allocation17] sm:$0xff] %v1018
    %1025 = vst [vmem:[#allocation17 + $0x8] sm:$0xff] %v1021
    // Predicated region
    $region82: #{fwd.1} parent=1 // pred_check
      _
    $region83: #{fwd.1} parent=1 // pred_check_branch
      %1027 = sbr.rel (0) target = $region85
    $region84: #{fwd.1} parent=1 // pred_region
      %s1029 = ssub.s32 256, 256
      %1030 = vsyncadd [#allocation4], %s1029
      %s1031 = sshll.u32 [#allocation17], 4
      %s1032 = int_to_ptr.vmem [resolvable:$true] %s1031
      %1037 = dma.vmem_to_hbm [thread:$0]  %s1032, 256, %s11, [#allocation4], 128, 128, 8
    $region85: #{fwd.1} parent=1 // pred_fallthru
      _
    // Predicated region
    $region86: #{fwd.1} parent=1 // pred_check
      _
    $region87: #{fwd.1} parent=1 // pred_check_branch
      %1039 = sbr.rel (0) target = $region89
    $region88: #{fwd.1} parent=1 // pred_region
      %1040 = dma.done [#allocation4], 256
    $region89: #{fwd.1} parent=1 // pred_fallthru
      _
    %1041 = vsyncpa [#allocation3], 1
    %1042 = vsyncpa [#allocation6], 1
    %1043 = vsyncpa [#allocation9], 1
    %1044 = vsyncpa [#allocation12], 1
    %1045 = vsyncpa [#allocation15], 1
    %1046 = vsyncpa [#allocation4], 1

</llo_original>
